<compile_context>
chip_gen: v7x
topology: tpu7x:2x2x1
jax: 0.10.0
libtpu: 0.0.40
codegen_flags: <defaults>
</compile_context>

<pallas_src>
import functools

import jax
import jax.numpy as jnp
from jax import lax
from jax.experimental import pallas as pl
from jax.experimental.pallas import tpu as pltpu


def _vmem():
    return pl.BlockSpec(memory_space=pltpu.MemorySpace.VMEM)


# ----------------------------------------------------------------------------
# Fused EXTRA forward.  All state lives flattened & lane-dense as (1, N*D).
#
#   init :  x1 = x @ Kinit - bs ;  x0 = x ;  z_prev = x
#   loop :  z     = x1 * invv[i]
#           d     = (z - z_prev) @ Gs          # == step * (grad(z) - grad(z_prev))
#           y     = x1 - 0.5 * x0
#           x_new = y @ Kp - d                 # == (W + I) @ y - d
#           carry <- (x_new, x1, z)
#   out  :  z from the last iteration (lane-dense (1, ND) store).
# ----------------------------------------------------------------------------
def _fused_extra_kernel(Kinit_ref, Kp_ref, Gs_ref, bs_ref, invv_ref, x_ref,
                        z_out, *, num_inner, unroll):
    x_init = x_ref[...]                                          # (1, ND)

    # --- layer 0 (init step); gradient + mixing pre-folded into Kinit / bs ---
    x1 = jnp.dot(x_init, Kinit_ref[...],
                 preferred_element_type=jnp.float32) - bs_ref[...]
    x0 = x_init
    z_prev = x_init
    z = x_init        # placeholder; wrapper guarantees num_inner >= 1

    def body(i, carry):
        x1, x0, z_prev, _ = carry
        z = x1 * invv_ref[pl.ds(i, 1), :]                        # (1, ND)
        d = jnp.dot(z - z_prev, Gs_ref[...],
                    preferred_element_type=jnp.float32)          # step*(g1-g0)
        y = x1 - 0.5 * x0
        x_new = jnp.dot(y, Kp_ref[...],
                        preferred_element_type=jnp.float32) - d
        return (x_new, x1, z, z)

    carry = lax.fori_loop(0, num_inner, body, (x1, x0, z_prev, z),
                          unroll=unroll)
    z_out[...] = carry[3]                                        # lane-dense store


def net_extra_fused(W, A, b, x, num_layers, step_size):
    # NOTE: the original PyTorch module leaves `z` undefined when
    # num_layers == 1 (the loop never runs); we require num_layers >= 2.
    if num_layers < 2:
        raise ValueError("num_layers must be >= 2")

    N, D = x.shape
    ND = N * D
    step = jnp.float32(step_size)
    hp = lax.Precision.HIGHEST

    eye_D = jnp.eye(D, dtype=jnp.float32)
    eye_N = jnp.eye(N, dtype=jnp.float32)

    # x_flat @ Kmix == (W @ X).flatten()
    Kmix = jnp.kron(W.T.astype(jnp.float32), eye_D)              # (ND, ND)
    # Gs[n*D+k, n*D+d] = 2*step*A[n, d, k]  (block-diagonal)
    Gs = jnp.einsum('nm,nkd->nkmd', eye_N,
                    (2.0 * step) * jnp.swapaxes(A, 1, 2)).reshape(ND, ND)
    Kinit = Kmix - Gs
    Kp = Kmix + jnp.eye(ND, dtype=jnp.float32)
    bs = (step * b).reshape(1, ND)
    x_flat = x.reshape(1, ND).astype(jnp.float32)

    # inv_v table for every loop iteration (v_k = W^k @ 1, taken BEFORE the
    # in-loop update, matching the reference).  Row-stochastic W => all ones.
    def _v_step(v, _):
        return jnp.dot(W, v, precision=hp), 1.0 / v
    _, invv = lax.scan(_v_step, jnp.ones((N,), jnp.float32),
                       None, length=num_layers - 1)              # (L-1, N)
    invv_flat = jnp.repeat(invv, D, axis=1)                      # (L-1, ND)

    num_inner = num_layers - 1
    unroll = max(1, min(4, num_inner))   # bounded unroll: pure recurrence

    cost = pl.CostEstimate(
        flops=2 * ND * ND * (1 + 2 * num_inner),
        transcendentals=0,
        bytes_accessed=4 * (3 * ND * ND + (num_inner + 4) * ND),
    )

    z_flat = pl.pallas_call(
        functools.partial(_fused_extra_kernel,
                          num_inner=num_inner, unroll=unroll),
        out_shape=jax.ShapeDtypeStruct((1, ND), jnp.float32),
        in_specs=[_vmem()] * 6,
        out_specs=_vmem(),
        cost_estimate=cost,
    )(Kinit, Kp, Gs, bs, invv_flat, x_flat)
    return z_flat.reshape(N, D)


# ----------------------------------------------------------------------------
# Full Net_EXTRA.forward (graph -> mixing matrix in plain JAX, rest in Pallas)
# ----------------------------------------------------------------------------
def build_mixing(edge_index, num_nodes):
    adj = jnp.zeros((num_nodes, num_nodes), jnp.float32)
    adj = adj.at[edge_index[0], edge_index[1]].set(1.0)
    adj = adj + jnp.eye(num_nodes, dtype=jnp.float32)            # self loops
    deg = jnp.sum(adj, axis=1, keepdims=True)
    return adj / deg                                             # row-stochastic


@functools.partial(jax.jit, static_argnames=("num_layers", "step_size"))
def _forward_jit(x, A, b, edge_index, num_layers, step_size):
    W = build_mixing(edge_index, x.shape[0])                     # built once
    return net_extra_fused(W, A, b, x, num_layers, step_size)


def net_extra_forward(x, A, b, edge_index, num_layers, step_size):
    z = _forward_jit(x, A, b, edge_index, int(num_layers), float(step_size))
    # TODO(synk): GATConv.comm_cost exact definition unknown; counted as one
    #             edge-set exchange per layer, matching the original's
    #             once-per-layer accumulation.
    comm_cost = int(num_layers) * int(edge_index.shape[1])
    return z, comm_cost


# ----------------------------------------------------------------------------
# Pure-JAX reference (straightforward transcription of the PyTorch forward)
# ----------------------------------------------------------------------------
def _ref_forward(x, A, b, edge_index, num_layers, step_size):
    hp = lax.Precision.HIGHEST
    N, _ = x.shape
    W = build_mixing(edge_index, N)
    grad_fn = lambda xx: 2.0 * jnp.einsum('ndk,nk->nd', A, xx, precision=hp) + b
    x_1, z_0 = x, x
    x_new = jnp.dot(W, z_0, precision=hp) - step_size * grad_fn(z_0)
    v = jnp.ones((N, 1), jnp.float32)
    x_0, x_1 = x_1, x_new
    z = None
    for _ in range(1, num_layers):
        z = x_1 / v
        g1, g0 = grad_fn(z), grad_fn(z_0)
        x_new = (jnp.dot(W, x_1, precision=hp) + x_1
                 - 0.5 * jnp.dot(W, x_0, precision=hp) - 0.5 * x_0
                 - step_size * (g1 - g0))
        v = jnp.dot(W, v, precision=hp)
        z_0, x_0, x_1 = z, x_1, x_new
    return z


if __name__ == "__main__":
    N, D = 8, 16            # num_nodes, dim  (N*D = 128 -> fully lane-dense)
    num_layers = 4
    step_size = 0.05

    key = jax.random.PRNGKey(0)
    k1, k2, k3 = jax.random.split(key, 3)

    # deterministic per-node PSD matrices A, linear terms b, initial x
    R = jax.random.normal(k1, (N, D, D), jnp.float32)
    A = jnp.einsum('nij,nkj->nik', R, R) / D \
        + 0.5 * jnp.eye(D, dtype=jnp.float32)[None]
    b = jax.random.normal(k2, (N, D), jnp.float32)
    x0 = jax.random.normal(k3, (N, D), jnp.float32)

    # ring graph edge_index (both directions), shape (2, 2N)
    src = jnp.arange(N, dtype=jnp.int32)
    dst = (src + 1) % N
    edge_index = jnp.stack(
        [jnp.concatenate([src, dst]), jnp.concatenate([dst, src])], axis=0)

    z, comm_cost = net_extra_forward(x0, A, b, edge_index, num_layers, step_size)
    z = jax.block_until_ready(z)

    z_ref = _ref_forward(x0, A, b, edge_index, num_layers, step_size)
    assert jnp.allclose(z, z_ref, rtol=1e-3, atol=1e-3), "mismatch vs reference"
    assert comm_cost == num_layers * int(edge_index.shape[1])

    print("KERNEL_OK")
</pallas_src>

<mosaic_0001>
module attributes {stable_mosaic.version = 11 : i64} {
  func.func @_fused_extra_kernel(%arg0: memref<128x128xf32, #tpu.memory_space<vmem>>, %arg1: memref<128x128xf32, #tpu.memory_space<vmem>>, %arg2: memref<128x128xf32, #tpu.memory_space<vmem>>, %arg3: memref<1x128xf32, #tpu.memory_space<vmem>>, %arg4: memref<3x128xf32, #tpu.memory_space<vmem>>, %arg5: memref<1x128xf32, #tpu.memory_space<vmem>>, %arg6: memref<1x128xf32, #tpu.memory_space<vmem>>) attributes {dimension_semantics = [], scalar_prefetch = 0 : i64, scratch_operands = 0 : i64, tpu.core_type = #tpu.core_type<tc>} {
    %c0 = arith.constant 0 : index
    %c0_0 = arith.constant 0 : index
    %0 = vector.load %arg5[%c0, %c0_0] : memref<1x128xf32, #tpu.memory_space<vmem>>, vector<1x128xf32>
    %c0_1 = arith.constant 0 : index
    %c0_2 = arith.constant 0 : index
    %1 = vector.load %arg0[%c0_1, %c0_2] : memref<128x128xf32, #tpu.memory_space<vmem>>, vector<128x128xf32>
    %cst = arith.constant dense<0.000000e+00> : vector<1x128xf32>
    %2 = tpu.matmul %0, %1, %cst {dimension_numbers = #tpu.dot_dimension_numbers<[1], [0], [0], [1], [0, 0, 1, 1], [], []>} : vector<1x128xf32>, vector<128x128xf32>, vector<1x128xf32> -> vector<1x128xf32>
    %c0_3 = arith.constant 0 : index
    %c0_4 = arith.constant 0 : index
    %3 = vector.load %arg3[%c0_3, %c0_4] : memref<1x128xf32, #tpu.memory_space<vmem>>, vector<1x128xf32>
    %4 = arith.subf %2, %3 : vector<1x128xf32>
    %c0_i32 = arith.constant 0 : i32
    %5 = arith.index_cast %c0_i32 : i32 to index
    %c0_5 = arith.constant 0 : index
    %6 = vector.load %arg4[%5, %c0_5] : memref<3x128xf32, #tpu.memory_space<vmem>>, vector<1x128xf32>
    %7 = arith.mulf %4, %6 : vector<1x128xf32>
    %8 = arith.subf %7, %0 : vector<1x128xf32>
    %c0_6 = arith.constant 0 : index
    %c0_7 = arith.constant 0 : index
    %9 = vector.load %arg2[%c0_6, %c0_7] : memref<128x128xf32, #tpu.memory_space<vmem>>, vector<128x128xf32>
    %cst_8 = arith.constant dense<0.000000e+00> : vector<1x128xf32>
    %10 = tpu.matmul %8, %9, %cst_8 {dimension_numbers = #tpu.dot_dimension_numbers<[1], [0], [0], [1], [0, 0, 1, 1], [], []>} : vector<1x128xf32>, vector<128x128xf32>, vector<1x128xf32> -> vector<1x128xf32>
    %cst_9 = arith.constant 5.000000e-01 : f32
    %11 = vector.broadcast %cst_9 : f32 to vector<1x128xf32>
    %12 = arith.mulf %11, %0 : vector<1x128xf32>
    %13 = arith.subf %4, %12 : vector<1x128xf32>
    %c0_10 = arith.constant 0 : index
    %c0_11 = arith.constant 0 : index
    %14 = vector.load %arg1[%c0_10, %c0_11] : memref<128x128xf32, #tpu.memory_space<vmem>>, vector<128x128xf32>
    %cst_12 = arith.constant dense<0.000000e+00> : vector<1x128xf32>
    %15 = tpu.matmul %13, %14, %cst_12 {dimension_numbers = #tpu.dot_dimension_numbers<[1], [0], [0], [1], [0, 0, 1, 1], [], []>} : vector<1x128xf32>, vector<128x128xf32>, vector<1x128xf32> -> vector<1x128xf32>
    %16 = arith.subf %15, %10 : vector<1x128xf32>
    %c1_i32 = arith.constant 1 : i32
    %17 = arith.index_cast %c1_i32 : i32 to index
    %c0_13 = arith.constant 0 : index
    %18 = vector.load %arg4[%17, %c0_13] : memref<3x128xf32, #tpu.memory_space<vmem>>, vector<1x128xf32>
    %19 = arith.mulf %16, %18 : vector<1x128xf32>
    %20 = arith.subf %19, %7 : vector<1x128xf32>
    %c0_14 = arith.constant 0 : index
    %c0_15 = arith.constant 0 : index
    %21 = vector.load %arg2[%c0_14, %c0_15] : memref<128x128xf32, #tpu.memory_space<vmem>>, vector<128x128xf32>
    %cst_16 = arith.constant dense<0.000000e+00> : vector<1x128xf32>
    %22 = tpu.matmul %20, %21, %cst_16 {dimension_numbers = #tpu.dot_dimension_numbers<[1], [0], [0], [1], [0, 0, 1, 1], [], []>} : vector<1x128xf32>, vector<128x128xf32>, vector<1x128xf32> -> vector<1x128xf32>
    %cst_17 = arith.constant 5.000000e-01 : f32
    %23 = vector.broadcast %cst_17 : f32 to vector<1x128xf32>
    %24 = arith.mulf %23, %4 : vector<1x128xf32>
    %25 = arith.subf %16, %24 : vector<1x128xf32>
    %c0_18 = arith.constant 0 : index
    %c0_19 = arith.constant 0 : index
    %26 = vector.load %arg1[%c0_18, %c0_19] : memref<128x128xf32, #tpu.memory_space<vmem>>, vector<128x128xf32>
    %cst_20 = arith.constant dense<0.000000e+00> : vector<1x128xf32>
    %27 = tpu.matmul %25, %26, %cst_20 {dimension_numbers = #tpu.dot_dimension_numbers<[1], [0], [0], [1], [0, 0, 1, 1], [], []>} : vector<1x128xf32>, vector<128x128xf32>, vector<1x128xf32> -> vector<1x128xf32>
    %28 = arith.subf %27, %22 : vector<1x128xf32>
    %c2_i32 = arith.constant 2 : i32
    %29 = arith.index_cast %c2_i32 : i32 to index
    %c0_21 = arith.constant 0 : index
    %30 = vector.load %arg4[%29, %c0_21] : memref<3x128xf32, #tpu.memory_space<vmem>>, vector<1x128xf32>
    %31 = arith.mulf %28, %30 : vector<1x128xf32>
    %32 = arith.subf %31, %19 : vector<1x128xf32>
    %c0_22 = arith.constant 0 : index
    %c0_23 = arith.constant 0 : index
    %33 = vector.load %arg2[%c0_22, %c0_23] : memref<128x128xf32, #tpu.memory_space<vmem>>, vector<128x128xf32>
    %cst_24 = arith.constant dense<0.000000e+00> : vector<1x128xf32>
    %34 = tpu.matmul %32, %33, %cst_24 {dimension_numbers = #tpu.dot_dimension_numbers<[1], [0], [0], [1], [0, 0, 1, 1], [], []>} : vector<1x128xf32>, vector<128x128xf32>, vector<1x128xf32> -> vector<1x128xf32>
    %cst_25 = arith.constant 5.000000e-01 : f32
    %35 = vector.broadcast %cst_25 : f32 to vector<1x128xf32>
    %36 = arith.mulf %35, %16 : vector<1x128xf32>
    %37 = arith.subf %28, %36 : vector<1x128xf32>
    %c0_26 = arith.constant 0 : index
    %c0_27 = arith.constant 0 : index
    %38 = vector.load %arg1[%c0_26, %c0_27] : memref<128x128xf32, #tpu.memory_space<vmem>>, vector<128x128xf32>
    %cst_28 = arith.constant dense<0.000000e+00> : vector<1x128xf32>
    %39 = tpu.matmul %37, %38, %cst_28 {dimension_numbers = #tpu.dot_dimension_numbers<[1], [0], [0], [1], [0, 0, 1, 1], [], []>} : vector<1x128xf32>, vector<128x128xf32>, vector<1x128xf32> -> vector<1x128xf32>
    %40 = arith.subf %39, %34 : vector<1x128xf32>
    %c3_i32 = arith.constant 3 : i32
    %c0_29 = arith.constant 0 : index
    %c0_30 = arith.constant 0 : index
    %41 = vector.load %arg6[%c0_29, %c0_30] : memref<1x128xf32, #tpu.memory_space<vmem>>, vector<1x128xf32>
    tpu.vector_store %arg6[%c0_29, %c0_30], %31 {strides = array<i32>} : memref<1x128xf32, #tpu.memory_space<vmem>>, vector<1x128xf32>,
    return
  }
}

</mosaic_0001>

<llo_original>
// kernel: custom-call.2
$region0: #{custom-call.2}
  %s0 = inlined_call_operand.vmem [shape: f32[3,8], index: 0, kind: output, shape index: {}]

// kernel: _forward_jit.1
$region0: #{_forward_jit.1}
  #allocation0 [shape = 'u32[]', space=smem, size = 0x4, offset = 0x4, fixed_abs, tag = 'smem constant byte address 0x4 - core index']
  #allocation1 [shape = 'u32[144,128]{1,0:T(1,128)}', space=vmem, size = 0x12000, scoped, tag = 'internal scratch']
  %s0 = inlined_call_operand.vmem [shape: f32[128,128], index: 0, kind: input, shape index: {}]
  %s1 = inlined_call_operand.vmem [shape: f32[128,128], index: 1, kind: input, shape index: {}]
  %s2 = inlined_call_operand.vmem [shape: f32[128,128], index: 2, kind: input, shape index: {}]
  %s3 = inlined_call_operand.vmem [shape: f32[1,128], index: 3, kind: input, shape index: {}]
  %s4 = inlined_call_operand.vmem [shape: f32[3,128], index: 4, kind: input, shape index: {}]
  %s5 = inlined_call_operand.vmem [shape: f32[1,128], index: 5, kind: input, shape index: {}]
  %s6 = inlined_call_operand.vmem [shape: f32[1,128], index: 6, kind: output, shape index: {}]
  %s7 = sld [smem:[#allocation0]]
  $region34: #{_forward_jit.1} parent=0
    _
  %s9 = ssub.s32 1, %s7
  %s10 = scalar_select 0, %s9, %s7
  // Predicated region
  $region2: #{_forward_jit.1} parent=0 // pred_check
    _
  $region3: #{_forward_jit.1} parent=0 // pred_check_branch
    %12 = sbr.rel (0) target = $region5
  $region4: #{_forward_jit.1} parent=0 // pred_region
    _
  $region5: #{_forward_jit.1} parent=0 // pred_fallthru
    _
  // Predicated region
  $region6: #{_forward_jit.1} parent=0 // pred_check
    _
  $region7: #{_forward_jit.1} parent=0 // pred_check_branch
    %14 = sbr.rel (0) target = $region9
  $region8: #{_forward_jit.1} parent=0 // pred_region
    _
  $region9: #{_forward_jit.1} parent=0 // pred_fallthru
    _
  // Predicated region
  $region10: #{_forward_jit.1} parent=0 // pred_check
    _
  $region11: #{_forward_jit.1} parent=0 // pred_check_branch
    %16 = sbr.rel (0) target = $region13
  $region12: #{_forward_jit.1} parent=0 // pred_region
    _
  $region13: #{_forward_jit.1} parent=0 // pred_fallthru
    _
  // Predicated region
  $region14: #{_forward_jit.1} parent=0 // pred_check
    _
  $region15: #{_forward_jit.1} parent=0 // pred_check_branch
    %18 = sbr.rel (0) target = $region17
  $region16: #{_forward_jit.1} parent=0 // pred_region
    _
  $region17: #{_forward_jit.1} parent=0 // pred_fallthru
    _
  // Predicated region
  $region18: #{_forward_jit.1} parent=0 // pred_check
    _
  $region19: #{_forward_jit.1} parent=0 // pred_check_branch
    %20 = sbr.rel (0) target = $region21
  $region20: #{_forward_jit.1} parent=0 // pred_region
    _
  $region21: #{_forward_jit.1} parent=0 // pred_fallthru
    _
  // Predicated region
  $region22: #{_forward_jit.1} parent=0 // pred_check
    _
  $region23: #{_forward_jit.1} parent=0 // pred_check_branch
    %22 = sbr.rel (0) target = $region25
  $region24: #{_forward_jit.1} parent=0 // pred_region
    _
  $region25: #{_forward_jit.1} parent=0 // pred_fallthru
    _
  %v23 = vld [vmem:[%s5] sm:$0x1]
  %v24 = vld [vmem:[%s0] sm:$0xff]
  %v25 = vld [vmem:[%s0 + $0x8] sm:$0xff]
  %v26 = vld [vmem:[%s0 + $0x10] sm:$0xff]
  %v27 = vld [vmem:[%s0 + $0x18] sm:$0xff]
  %v28 = vld [vmem:[%s0 + $0x20] sm:$0xff]
  %v29 = vld [vmem:[%s0 + $0x28] sm:$0xff]
  %v30 = vld [vmem:[%s0 + $0x30] sm:$0xff]
  %v31 = vld [vmem:[%s0 + $0x38] sm:$0xff]
  %v32 = vld [vmem:[%s0 + $0x40] sm:$0xff]
  %v33 = vld [vmem:[%s0 + $0x48] sm:$0xff]
  %v34 = vld [vmem:[%s0 + $0x50] sm:$0xff]
  %v35 = vld [vmem:[%s0 + $0x58] sm:$0xff]
  %v36 = vld [vmem:[%s0 + $0x60] sm:$0xff]
  %v37 = vld [vmem:[%s0 + $0x68] sm:$0xff]
  %v38 = vld [vmem:[%s0 + $0x70] sm:$0xff]
  %v39 = vld [vmem:[%s0 + $0x78] sm:$0xff]
  %40 = vmatprep.subr.mxu0 0.0
  %41 = vmatpush1.msra.mxu0 %v24
  %42 = vmatprep.subr.mxu0 0.0
  %43 = vmatpush1.msra.mxu0 %v25
  %44 = vmatprep.subr.mxu0 0.0
  %45 = vmatpush1.msra.mxu0 %v26
  %46 = vmatprep.subr.mxu0 0.0
  %47 = vmatpush1.msra.mxu0 %v27
  %48 = vmatprep.subr.mxu0 0.0
  %49 = vmatpush1.msra.mxu0 %v28
  %50 = vmatprep.subr.mxu0 0.0
  %51 = vmatpush1.msra.mxu0 %v29
  %52 = vmatprep.subr.mxu0 0.0
  %53 = vmatpush1.msra.mxu0 %v30
  %54 = vmatprep.subr.mxu0 0.0
  %55 = vmatpush1.msra.mxu0 %v31
  %56 = vmatprep.subr.mxu0 0.0
  %57 = vmatpush1.msra.mxu0 %v32
  %58 = vmatprep.subr.mxu0 0.0
  %59 = vmatpush1.msra.mxu0 %v33
  %60 = vmatprep.subr.mxu0 0.0
  %61 = vmatpush1.msra.mxu0 %v34
  %62 = vmatprep.subr.mxu0 0.0
  %63 = vmatpush1.msra.mxu0 %v35
  %64 = vmatprep.subr.mxu0 0.0
  %65 = vmatpush1.msra.mxu0 %v36
  %66 = vmatprep.subr.mxu0 0.0
  %67 = vmatpush1.msra.mxu0 %v37
  %68 = vmatprep.subr.mxu0 0.0
  %69 = vmatpush1.msra.mxu0 %v38
  %70 = vmatprep.subr.mxu0 0.0
  %71 = vmatpush1.msra.mxu0 %v39
  %72 = vmatprep.subr.mxu0 0.0
  %73 = vmatpush1.msra.mxu0 0.0
  %74 = vmatprep.subr.mxu0 0.0
  %75 = vmatpush1.msra.mxu0 0.0
  %76 = vmatprep.subr.mxu0 0.0
  %77 = vmatpush1.msra.mxu0 0.0
  %78 = vmatprep.subr.mxu0 0.0
  %79 = vmatpush1.msra.mxu0 0.0
  %80 = vmatprep.subr.mxu0 0.0
  %81 = vmatpush1.msra.mxu0 0.0
  %82 = vmatprep.subr.mxu0 0.0
  %83 = vmatpush1.msra.mxu0 0.0
  %84 = vmatprep.subr.mxu0 0.0
  %85 = vmatpush1.msra.mxu0 0.0
  %86 = vmatprep.subr.mxu0 0.0
  %87 = vmatpush1.msra.mxu0 0.0
  %88 = vmatprep.subr.mxu0 0.0
  %89 = vmatpush1.msra.mxu0 0.0
  %90 = vmatprep.subr.mxu0 0.0
  %91 = vmatpush1.msra.mxu0 0.0
  %92 = vmatprep.subr.mxu0 0.0
  %93 = vmatpush1.msra.mxu0 0.0
  %94 = vmatprep.subr.mxu0 0.0
  %95 = vmatpush1.msra.mxu0 0.0
  %96 = vmatprep.subr.mxu0 0.0
  %97 = vmatpush1.msra.mxu0 0.0
  %98 = vmatprep.subr.mxu0 0.0
  %99 = vmatpush1.msra.mxu0 0.0
  %100 = vmatprep.subr.mxu0 0.0
  %101 = vmatpush1.msra.mxu0 0.0
  %102 = vmatprep.subr.mxu0 0.0
  %103 = vmatpush1.msra.mxu0 0.0
  %104 = vmatprep.mubr.f32.mxu0 0.0
  %105 = vmatmul.mubr.f32.gmra.mrb[0].mxu0 %v23
  %v106 = vpop.f32.mrb[0].mxu0
  %v107 = vadd.f32 0.0, %v106
  %v108 = vpop.f32.mrb[0].mxu0
  %109 = vdwg.mxu0
  %v110 = vld [vmem:[%s3] sm:$0x1]
  %v111 = vsub.f32 %v107, %v110
  %v112 = vld [vmem:[%s4] sm:$0x1]
  %v113 = vmul.f32 %v111, %v112
  %v114 = vsub.f32 %v113, %v23
  %v115 = vld [vmem:[%s2] sm:$0xff]
  %v116 = vld [vmem:[%s2 + $0x8] sm:$0xff]
  %v117 = vld [vmem:[%s2 + $0x10] sm:$0xff]
  %v118 = vld [vmem:[%s2 + $0x18] sm:$0xff]
  %v119 = vld [vmem:[%s2 + $0x20] sm:$0xff]
  %v120 = vld [vmem:[%s2 + $0x28] sm:$0xff]
  %v121 = vld [vmem:[%s2 + $0x30] sm:$0xff]
  %v122 = vld [vmem:[%s2 + $0x38] sm:$0xff]
  %v123 = vld [vmem:[%s2 + $0x40] sm:$0xff]
  %v124 = vld [vmem:[%s2 + $0x48] sm:$0xff]
  %v125 = vld [vmem:[%s2 + $0x50] sm:$0xff]
  %v126 = vld [vmem:[%s2 + $0x58] sm:$0xff]
  %v127 = vld [vmem:[%s2 + $0x60] sm:$0xff]
  %v128 = vld [vmem:[%s2 + $0x68] sm:$0xff]
  %v129 = vld [vmem:[%s2 + $0x70] sm:$0xff]
  %v130 = vld [vmem:[%s2 + $0x78] sm:$0xff]
  %131 = vmatprep.subr.mxu0 0.0
  %132 = vmatpush1.msra.mxu0 %v115
  %133 = vmatprep.subr.mxu0 0.0
  %134 = vmatpush1.msra.mxu0 %v116
  %135 = vmatprep.subr.mxu0 0.0
  %136 = vmatpush1.msra.mxu0 %v117
  %137 = vmatprep.subr.mxu0 0.0
  %138 = vmatpush1.msra.mxu0 %v118
  %139 = vmatprep.subr.mxu0 0.0
  %140 = vmatpush1.msra.mxu0 %v119
  %141 = vmatprep.subr.mxu0 0.0
  %142 = vmatpush1.msra.mxu0 %v120
  %143 = vmatprep.subr.mxu0 0.0
  %144 = vmatpush1.msra.mxu0 %v121
  %145 = vmatprep.subr.mxu0 0.0
  %146 = vmatpush1.msra.mxu0 %v122
  %147 = vmatprep.subr.mxu0 0.0
  %148 = vmatpush1.msra.mxu0 %v123
  %149 = vmatprep.subr.mxu0 0.0
  %150 = vmatpush1.msra.mxu0 %v124
  %151 = vmatprep.subr.mxu0 0.0
  %152 = vmatpush1.msra.mxu0 %v125
  %153 = vmatprep.subr.mxu0 0.0
  %154 = vmatpush1.msra.mxu0 %v126
  %155 = vmatprep.subr.mxu0 0.0
  %156 = vmatpush1.msra.mxu0 %v127
  %157 = vmatprep.subr.mxu0 0.0
  %158 = vmatpush1.msra.mxu0 %v128
  %159 = vmatprep.subr.mxu0 0.0
  %160 = vmatpush1.msra.mxu0 %v129
  %161 = vmatprep.subr.mxu0 0.0
  %162 = vmatpush1.msra.mxu0 %v130
  %163 = vmatprep.subr.mxu0 0.0
  %164 = vmatpush1.msra.mxu0 0.0
  %165 = vmatprep.subr.mxu0 0.0
  %166 = vmatpush1.msra.mxu0 0.0
  %167 = vmatprep.subr.mxu0 0.0
  %168 = vmatpush1.msra.mxu0 0.0
  %169 = vmatprep.subr.mxu0 0.0
  %170 = vmatpush1.msra.mxu0 0.0
  %171 = vmatprep.subr.mxu0 0.0
  %172 = vmatpush1.msra.mxu0 0.0
  %173 = vmatprep.subr.mxu0 0.0
  %174 = vmatpush1.msra.mxu0 0.0
  %175 = vmatprep.subr.mxu0 0.0
  %176 = vmatpush1.msra.mxu0 0.0
  %177 = vmatprep.subr.mxu0 0.0
  %178 = vmatpush1.msra.mxu0 0.0
  %179 = vmatprep.subr.mxu0 0.0
  %180 = vmatpush1.msra.mxu0 0.0
  %181 = vmatprep.subr.mxu0 0.0
  %182 = vmatpush1.msra.mxu0 0.0
  %183 = vmatprep.subr.mxu0 0.0
  %184 = vmatpush1.msra.mxu0 0.0
  %185 = vmatprep.subr.mxu0 0.0
  %186 = vmatpush1.msra.mxu0 0.0
  %187 = vmatprep.subr.mxu0 0.0
  %188 = vmatpush1.msra.mxu0 0.0
  %189 = vmatprep.subr.mxu0 0.0
  %190 = vmatpush1.msra.mxu0 0.0
  %191 = vmatprep.subr.mxu0 0.0
  %192 = vmatpush1.msra.mxu0 0.0
  %193 = vmatprep.subr.mxu0 0.0
  %194 = vmatpush1.msra.mxu0 0.0
  %195 = vmatprep.mubr.f32.mxu0 0.0
  %196 = vmatmul.mubr.f32.gmra.mrb[0].mxu0 %v114
  %v197 = vpop.f32.mrb[0].mxu0
  %v198 = vadd.f32 0.0, %v197
  %v199 = vpop.f32.mrb[0].mxu0
  %200 = vdwg.mxu0
  %v201 = vmul.f32 %v23, 0.5
  %v202 = vsub.f32 %v111, %v201
  %v203 = vld [vmem:[%s1] sm:$0xff]
  %v204 = vld [vmem:[%s1 + $0x8] sm:$0xff]
  %v205 = vld [vmem:[%s1 + $0x10] sm:$0xff]
  %v206 = vld [vmem:[%s1 + $0x18] sm:$0xff]
  %v207 = vld [vmem:[%s1 + $0x20] sm:$0xff]
  %v208 = vld [vmem:[%s1 + $0x28] sm:$0xff]
  %v209 = vld [vmem:[%s1 + $0x30] sm:$0xff]
  %v210 = vld [vmem:[%s1 + $0x38] sm:$0xff]
  %v211 = vld [vmem:[%s1 + $0x40] sm:$0xff]
  %v212 = vld [vmem:[%s1 + $0x48] sm:$0xff]
  %v213 = vld [vmem:[%s1 + $0x50] sm:$0xff]
  %v214 = vld [vmem:[%s1 + $0x58] sm:$0xff]
  %v215 = vld [vmem:[%s1 + $0x60] sm:$0xff]
  %v216 = vld [vmem:[%s1 + $0x68] sm:$0xff]
  %v217 = vld [vmem:[%s1 + $0x70] sm:$0xff]
  %v218 = vld [vmem:[%s1 + $0x78] sm:$0xff]
  %219 = vmatprep.subr.mxu0 0.0
  %220 = vmatpush1.msra.mxu0 %v203
  %221 = vmatprep.subr.mxu0 0.0
  %222 = vmatpush1.msra.mxu0 %v204
  %223 = vmatprep.subr.mxu0 0.0
  %224 = vmatpush1.msra.mxu0 %v205
  %225 = vmatprep.subr.mxu0 0.0
  %226 = vmatpush1.msra.mxu0 %v206
  %227 = vmatprep.subr.mxu0 0.0
  %228 = vmatpush1.msra.mxu0 %v207
  %229 = vmatprep.subr.mxu0 0.0
  %230 = vmatpush1.msra.mxu0 %v208
  %231 = vmatprep.subr.mxu0 0.0
  %232 = vmatpush1.msra.mxu0 %v209
  %233 = vmatprep.subr.mxu0 0.0
  %234 = vmatpush1.msra.mxu0 %v210
  %235 = vmatprep.subr.mxu0 0.0
  %236 = vmatpush1.msra.mxu0 %v211
  %237 = vmatprep.subr.mxu0 0.0
  %238 = vmatpush1.msra.mxu0 %v212
  %239 = vmatprep.subr.mxu0 0.0
  %240 = vmatpush1.msra.mxu0 %v213
  %241 = vmatprep.subr.mxu0 0.0
  %242 = vmatpush1.msra.mxu0 %v214
  %243 = vmatprep.subr.mxu0 0.0
  %244 = vmatpush1.msra.mxu0 %v215
  %245 = vmatprep.subr.mxu0 0.0
  %246 = vmatpush1.msra.mxu0 %v216
  %247 = vmatprep.subr.mxu0 0.0
  %248 = vmatpush1.msra.mxu0 %v217
  %249 = vmatprep.subr.mxu0 0.0
  %250 = vmatpush1.msra.mxu0 %v218
  %251 = vmatprep.subr.mxu0 0.0
  %252 = vmatpush1.msra.mxu0 0.0
  %253 = vmatprep.subr.mxu0 0.0
  %254 = vmatpush1.msra.mxu0 0.0
  %255 = vmatprep.subr.mxu0 0.0
  %256 = vmatpush1.msra.mxu0 0.0
  %257 = vmatprep.subr.mxu0 0.0
  %258 = vmatpush1.msra.mxu0 0.0
  %259 = vmatprep.subr.mxu0 0.0
  %260 = vmatpush1.msra.mxu0 0.0
  %261 = vmatprep.subr.mxu0 0.0
  %262 = vmatpush1.msra.mxu0 0.0
  %263 = vmatprep.subr.mxu0 0.0
  %264 = vmatpush1.msra.mxu0 0.0
  %265 = vmatprep.subr.mxu0 0.0
  %266 = vmatpush1.msra.mxu0 0.0
  %267 = vmatprep.subr.mxu0 0.0
  %268 = vmatpush1.msra.mxu0 0.0
  %269 = vmatprep.subr.mxu0 0.0
  %270 = vmatpush1.msra.mxu0 0.0
  %271 = vmatprep.subr.mxu0 0.0
  %272 = vmatpush1.msra.mxu0 0.0
  %273 = vmatprep.subr.mxu0 0.0
  %274 = vmatpush1.msra.mxu0 0.0
  %275 = vmatprep.subr.mxu0 0.0
  %276 = vmatpush1.msra.mxu0 0.0
  %277 = vmatprep.subr.mxu0 0.0
  %278 = vmatpush1.msra.mxu0 0.0
  %279 = vmatprep.subr.mxu0 0.0
  %280 = vmatpush1.msra.mxu0 0.0
  %281 = vmatprep.subr.mxu0 0.0
  %282 = vmatpush1.msra.mxu0 0.0
  %283 = vmatprep.mubr.f32.mxu0 0.0
  %284 = vmatmul.mubr.f32.gmra.mrb[0].mxu0 %v202
  %v285 = vpop.f32.mrb[0].mxu0
  %v286 = vadd.f32 0.0, %v285
  %v287 = vpop.f32.mrb[0].mxu0
  %288 = vdwg.mxu0
  %v289 = vsub.f32 %v286, %v198
  %v290 = vld [vmem:[%s4 + $0x1] sm:$0x1]
  %v291 = vmul.f32 %v289, %v290
  %v292 = vsub.f32 %v291, %v113
  %293 = vmatprep.subr.mxu0 0.0
  %294 = vmatpush1.msra.mxu0 %v115
  %295 = vmatprep.subr.mxu0 0.0
  %296 = vmatpush1.msra.mxu0 %v116
  %297 = vmatprep.subr.mxu0 0.0
  %298 = vmatpush1.msra.mxu0 %v117
  %299 = vmatprep.subr.mxu0 0.0
  %300 = vmatpush1.msra.mxu0 %v118
  %301 = vmatprep.subr.mxu0 0.0
  %302 = vmatpush1.msra.mxu0 %v119
  %303 = vmatprep.subr.mxu0 0.0
  %304 = vmatpush1.msra.mxu0 %v120
  %305 = vmatprep.subr.mxu0 0.0
  %306 = vmatpush1.msra.mxu0 %v121
  %307 = vmatprep.subr.mxu0 0.0
  %308 = vmatpush1.msra.mxu0 %v122
  %309 = vmatprep.subr.mxu0 0.0
  %310 = vmatpush1.msra.mxu0 %v123
  %311 = vmatprep.subr.mxu0 0.0
  %312 = vmatpush1.msra.mxu0 %v124
  %313 = vmatprep.subr.mxu0 0.0
  %314 = vmatpush1.msra.mxu0 %v125
  %315 = vmatprep.subr.mxu0 0.0
  %316 = vmatpush1.msra.mxu0 %v126
  %317 = vmatprep.subr.mxu0 0.0
  %318 = vmatpush1.msra.mxu0 %v127
  %319 = vmatprep.subr.mxu0 0.0
  %320 = vmatpush1.msra.mxu0 %v128
  %321 = vmatprep.subr.mxu0 0.0
  %322 = vmatpush1.msra.mxu0 %v129
  %323 = vmatprep.subr.mxu0 0.0
  %324 = vmatpush1.msra.mxu0 %v130
  %325 = vmatprep.subr.mxu0 0.0
  %326 = vmatpush1.msra.mxu0 0.0
  %327 = vmatprep.subr.mxu0 0.0
  %328 = vmatpush1.msra.mxu0 0.0
  %329 = vmatprep.subr.mxu0 0.0
  %330 = vmatpush1.msra.mxu0 0.0
  %331 = vmatprep.subr.mxu0 0.0
  %332 = vmatpush1.msra.mxu0 0.0
  %333 = vmatprep.subr.mxu0 0.0
  %334 = vmatpush1.msra.mxu0 0.0
  %335 = vmatprep.subr.mxu0 0.0
  %336 = vmatpush1.msra.mxu0 0.0
  %337 = vmatprep.subr.mxu0 0.0
  %338 = vmatpush1.msra.mxu0 0.0
  %339 = vmatprep.subr.mxu0 0.0
  %340 = vmatpush1.msra.mxu0 0.0
  %341 = vmatprep.subr.mxu0 0.0
  %342 = vmatpush1.msra.mxu0 0.0
  %343 = vmatprep.subr.mxu0 0.0
  %344 = vmatpush1.msra.mxu0 0.0
  %345 = vmatprep.subr.mxu0 0.0
  %346 = vmatpush1.msra.mxu0 0.0
  %347 = vmatprep.subr.mxu0 0.0
  %348 = vmatpush1.msra.mxu0 0.0
  %349 = vmatprep.subr.mxu0 0.0
  %350 = vmatpush1.msra.mxu0 0.0
  %351 = vmatprep.subr.mxu0 0.0
  %352 = vmatpush1.msra.mxu0 0.0
  %353 = vmatprep.subr.mxu0 0.0
  %354 = vmatpush1.msra.mxu0 0.0
  %355 = vmatprep.subr.mxu0 0.0
  %356 = vmatpush1.msra.mxu0 0.0
  %357 = vmatprep.mubr.f32.mxu0 0.0
  %358 = vmatmul.mubr.f32.gmra.mrb[0].mxu0 %v292
  %v359 = vpop.f32.mrb[0].mxu0
  %v360 = vadd.f32 0.0, %v359
  %v361 = vpop.f32.mrb[0].mxu0
  %362 = vdwg.mxu0
  %v363 = vmul.f32 %v111, 0.5
  %v364 = vsub.f32 %v289, %v363
  %365 = vmatprep.subr.mxu0 0.0
  %366 = vmatpush1.msra.mxu0 %v203
  %367 = vmatprep.subr.mxu0 0.0
  %368 = vmatpush1.msra.mxu0 %v204
  %369 = vmatprep.subr.mxu0 0.0
  %370 = vmatpush1.msra.mxu0 %v205
  %371 = vmatprep.subr.mxu0 0.0
  %372 = vmatpush1.msra.mxu0 %v206
  %373 = vmatprep.subr.mxu0 0.0
  %374 = vmatpush1.msra.mxu0 %v207
  %375 = vmatprep.subr.mxu0 0.0
  %376 = vmatpush1.msra.mxu0 %v208
  %377 = vmatprep.subr.mxu0 0.0
  %378 = vmatpush1.msra.mxu0 %v209
  %379 = vmatprep.subr.mxu0 0.0
  %380 = vmatpush1.msra.mxu0 %v210
  %381 = vmatprep.subr.mxu0 0.0
  %382 = vmatpush1.msra.mxu0 %v211
  %383 = vmatprep.subr.mxu0 0.0
  %384 = vmatpush1.msra.mxu0 %v212
  %385 = vmatprep.subr.mxu0 0.0
  %386 = vmatpush1.msra.mxu0 %v213
  %387 = vmatprep.subr.mxu0 0.0
  %388 = vmatpush1.msra.mxu0 %v214
  %389 = vmatprep.subr.mxu0 0.0
  %390 = vmatpush1.msra.mxu0 %v215
  %391 = vmatprep.subr.mxu0 0.0
  %392 = vmatpush1.msra.mxu0 %v216
  %393 = vmatprep.subr.mxu0 0.0
  %394 = vmatpush1.msra.mxu0 %v217
  %395 = vmatprep.subr.mxu0 0.0
  %396 = vmatpush1.msra.mxu0 %v218
  %397 = vmatprep.subr.mxu0 0.0
  %398 = vmatpush1.msra.mxu0 0.0
  %399 = vmatprep.subr.mxu0 0.0
  %400 = vmatpush1.msra.mxu0 0.0
  %401 = vmatprep.subr.mxu0 0.0
  %402 = vmatpush1.msra.mxu0 0.0
  %403 = vmatprep.subr.mxu0 0.0
  %404 = vmatpush1.msra.mxu0 0.0
  %405 = vmatprep.subr.mxu0 0.0
  %406 = vmatpush1.msra.mxu0 0.0
  %407 = vmatprep.subr.mxu0 0.0
  %408 = vmatpush1.msra.mxu0 0.0
  %409 = vmatprep.subr.mxu0 0.0
  %410 = vmatpush1.msra.mxu0 0.0
  %411 = vmatprep.subr.mxu0 0.0
  %412 = vmatpush1.msra.mxu0 0.0
  %413 = vmatprep.subr.mxu0 0.0
  %414 = vmatpush1.msra.mxu0 0.0
  %415 = vmatprep.subr.mxu0 0.0
  %416 = vmatpush1.msra.mxu0 0.0
  %417 = vmatprep.subr.mxu0 0.0
  %418 = vmatpush1.msra.mxu0 0.0
  %419 = vmatprep.subr.mxu0 0.0
  %420 = vmatpush1.msra.mxu0 0.0
  %421 = vmatprep.subr.mxu0 0.0
  %422 = vmatpush1.msra.mxu0 0.0
  %423 = vmatprep.subr.mxu0 0.0
  %424 = vmatpush1.msra.mxu0 0.0
  %425 = vmatprep.subr.mxu0 0.0
  %426 = vmatpush1.msra.mxu0 0.0
  %427 = vmatprep.subr.mxu0 0.0
  %428 = vmatpush1.msra.mxu0 0.0
  %429 = vmatprep.mubr.f32.mxu0 0.0
  %430 = vmatmul.mubr.f32.gmra.mrb[0].mxu0 %v364
  %v431 = vpop.f32.mrb[0].mxu0
  %v432 = vadd.f32 0.0, %v431
  %v433 = vpop.f32.mrb[0].mxu0
  %434 = vdwg.mxu0
  %v435 = vsub.f32 %v432, %v360
  %v436 = vld [vmem:[%s4 + $0x2] sm:$0x1]
  %v437 = vmul.f32 %v435, %v436
  %438 = vst [vmem:[%s6] sm:$0x1] %v437
  // Predicated region
  $region26: #{_forward_jit.1} parent=0 // pred_check
    _
  $region27: #{_forward_jit.1} parent=0 // pred_check_branch
    %440 = sbr.rel (0) target = $region29
  $region28: #{_forward_jit.1} parent=0 // pred_region
    _
  $region29: #{_forward_jit.1} parent=0 // pred_fallthru
    _
  // Predicated region
  $region30: #{_forward_jit.1} parent=0 // pred_check
    _
  $region31: #{_forward_jit.1} parent=0 // pred_check_branch
    %442 = sbr.rel (0) target = $region33
  $region32: #{_forward_jit.1} parent=0 // pred_region
    _
  $region33: #{_forward_jit.1} parent=0 // pred_fallthru
    _

</llo_original>
